<compile_context>
chip_gen: v6e
topology: v6e:2x2x1
jax: 0.10.0
libtpu: 0.0.40
codegen_flags: <defaults>
</compile_context>

<pallas_src>
import functools

import jax
import jax.numpy as jnp
from jax.experimental import pallas as pl
from jax.experimental.pallas import tpu as pltpu

BN_EPS = 1e-5
LEAKY_SLOPE = 0.01


# ----------------------------------------------------------------------------
# Kernel: 3 matmuls + 2 LeakyReLU + sigmoid on one (TB, F_in) batch tile.
# ----------------------------------------------------------------------------
def mlp_kernel(x_ref, w1_ref, b1_ref, w2_ref, b2_ref, w3_ref, b3_ref, o_ref):
    x = x_ref[...]                                                      # (TB, F_in)

    h = jnp.dot(x, w1_ref[...], preferred_element_type=jnp.float32)    # (TB, nodes)
    h = h + b1_ref[...]
    h = jnp.where(h >= 0, h, LEAKY_SLOPE * h)

    h = jnp.dot(h, w2_ref[...], preferred_element_type=jnp.float32)    # (TB, nodes//2)
    h = h + b2_ref[...]
    h = jnp.where(h >= 0, h, LEAKY_SLOPE * h)

    h = jnp.dot(h, w3_ref[...], preferred_element_type=jnp.float32)    # (TB, F_out)
    h = h + b3_ref[...]
    o_ref[...] = jax.nn.sigmoid(h)                                      # exp on EUP


# ----------------------------------------------------------------------------
# Wrapper: BN folding, batch padding/tiling, pallas_call.
# ----------------------------------------------------------------------------
def _fold_bn(w, b, gamma, beta, mean, var):
    """Fold eval-mode BatchNorm1d into the preceding Linear (exact)."""
    s = gamma * jax.lax.rsqrt(var + BN_EPS)          # (1, n)
    return w * s, (b - mean) * s + beta


def _round_up(x, m):
    return ((x + m - 1) // m) * m


@functools.partial(jax.jit, static_argnames=("tile_b",))
def neural_network_forward(x, params, tile_b=1024):
    """x: (B, size_inputs) float32. params: dict of weights (see init_params)."""
    B, F_in = x.shape
    n1 = params["w1"].shape[1]
    n2 = params["w2"].shape[1]
    n_out = params["w3"].shape[1]

    # --- fold BatchNorm into Linear 1 / Linear 2 (eval mode, exact) ---------
    w1f, b1f = _fold_bn(params["w1"], params["b1"],
                        params["g1"], params["be1"], params["m1"], params["v1"])
    w2f, b2f = _fold_bn(params["w2"], params["b2"],
                        params["g2"], params["be2"], params["m2"], params["v2"])
    w3, b3 = params["w3"], params["b3"]

    # --- batch tiling: biggest tile that fits comfortably in VMEM ----------
    # Per-tile footprint @ TB=1024: x tile 2*1024*32*4B = 256 KiB double-buffered
    # + out tile 32 KiB + weights (<1 tile each) -> far under v7x's 64 MiB.
    TB = min(int(tile_b), _round_up(B, 8))
    B_pad = _round_up(B, TB)
    if B_pad != B:
        x = jnp.pad(x, ((0, B_pad - B), (0, 0)))
    grid = (B_pad // TB,)

    # --- advisory cost estimate for the XLA scheduler -----------------------
    flops = 2 * B_pad * (F_in * n1 + n1 * n2 + n2 * n_out)
    transcendentals = B_pad * n_out                      # sigmoid exp
    bytes_accessed = 4 * (B_pad * F_in + B_pad * n_out
                          + F_in * n1 + n1 + n1 * n2 + n2 + n2 * n_out + n_out)

    resident = lambda i: (0, 0)                          # weights stay put

    out = pl.pallas_call(
        mlp_kernel,
        out_shape=jax.ShapeDtypeStruct((B_pad, n_out), jnp.float32),
        grid_spec=pltpu.PrefetchScalarGridSpec(
            num_scalar_prefetch=0,
            grid=grid,
            in_specs=[
                pl.BlockSpec((TB, F_in), lambda i: (i, 0)),          # x tile
                pl.BlockSpec(w1f.shape, resident),
                pl.BlockSpec(b1f.shape, resident),
                pl.BlockSpec(w2f.shape, resident),
                pl.BlockSpec(b2f.shape, resident),
                pl.BlockSpec(w3.shape, resident),
                pl.BlockSpec(b3.shape, resident),
            ],
            out_specs=pl.BlockSpec((TB, n_out), lambda i: (i, 0)),
        ),
        compiler_params=pltpu.CompilerParams(
            dimension_semantics=("parallel",)),          # megacore on v7x
        cost_estimate=pl.CostEstimate(
            flops=flops,
            transcendentals=transcendentals,
            bytes_accessed=bytes_accessed),
    )(x, w1f, b1f, w2f, b2f, w3, b3)

    return out[:B]


# ----------------------------------------------------------------------------
# Deterministic synthetic parameters (shapes match the PyTorch module).
# ----------------------------------------------------------------------------
def init_params(key, size_inputs, size_outputs, nodes=24):
    half = nodes // 2
    ks = jax.random.split(key, 12)

    def lin(kw, kb, fan_in, fan_out):
        # PyTorch Linear default init: U(-1/sqrt(fan_in), 1/sqrt(fan_in))
        bound = 1.0 / jnp.sqrt(fan_in)
        w = jax.random.uniform(kw, (fan_in, fan_out), jnp.float32, -bound, bound)
        b = jax.random.uniform(kb, (1, fan_out), jnp.float32, -bound, bound)
        return w, b

    w1, b1 = lin(ks[0], ks[1], size_inputs, nodes)
    w2, b2 = lin(ks[2], ks[3], nodes, half)
    w3, b3 = lin(ks[4], ks[5], half, size_outputs)

    def bn(kg, kb, km, kv, n):
        g = 1.0 + 0.1 * jax.random.normal(kg, (1, n), jnp.float32)           # weight
        be = 0.1 * jax.random.normal(kb, (1, n), jnp.float32)                # bias
        m = 0.1 * jax.random.normal(km, (1, n), jnp.float32)                 # running_mean
        v = jnp.abs(1.0 + 0.1 * jax.random.normal(kv, (1, n), jnp.float32))  # running_var
        return g, be, m, v

    g1, be1, m1, v1 = bn(ks[6], ks[7], ks[8], ks[9], nodes)
    g2, be2, m2, v2 = bn(ks[10], ks[11], ks[6], ks[7], half)

    return dict(w1=w1, b1=b1, g1=g1, be1=be1, m1=m1, v1=v1,
                w2=w2, b2=b2, g2=g2, be2=be2, m2=m2, v2=v2,
                w3=w3, b3=b3)


def reference_forward(x, p):
    """Pure-JAX reference of the same (eval-mode) forward pass, BN unfolded."""
    def bn(h, g, be, m, v):
        return (h - m) * jax.lax.rsqrt(v + BN_EPS) * g + be

    def lrelu(h):
        return jnp.where(h >= 0, h, LEAKY_SLOPE * h)

    h = x @ p["w1"] + p["b1"]
    h = lrelu(bn(h, p["g1"], p["be1"], p["m1"], p["v1"]))
    h = h @ p["w2"] + p["b2"]
    h = lrelu(bn(h, p["g2"], p["be2"], p["m2"], p["v2"]))
    h = h @ p["w3"] + p["b3"]
    return jax.nn.sigmoid(h)


if __name__ == "__main__":
    # Small shapes consistent with the module (tabular classifier).
    B, size_inputs, size_outputs, nodes = 8, 32, 4, 24

    key = jax.random.PRNGKey(0)
    kx, kp = jax.random.split(key)
    x = jax.random.normal(kx, (B, size_inputs), jnp.float32)
    params = init_params(kp, size_inputs, size_outputs, nodes)

    out = neural_network_forward(x, params)
    out = jax.block_until_ready(out)

    ref = reference_forward(x, params)
    assert out.shape == (B, size_outputs)
    assert jnp.allclose(out, ref, atol=1e-5, rtol=1e-5), "mismatch vs JAX reference"

    print("KERNEL_OK")
</pallas_src>

<mosaic_0001>
module attributes {stable_mosaic.version = 11 : i64} {
  func.func @mlp_kernel(%arg0: i32, %arg1: memref<8x32xf32, #tpu.memory_space<vmem>>, %arg2: memref<32x24xf32, #tpu.memory_space<vmem>>, %arg3: memref<1x24xf32, #tpu.memory_space<vmem>>, %arg4: memref<24x12xf32, #tpu.memory_space<vmem>>, %arg5: memref<1x12xf32, #tpu.memory_space<vmem>>, %arg6: memref<12x4xf32, #tpu.memory_space<vmem>>, %arg7: memref<1x4xf32, #tpu.memory_space<vmem>>, %arg8: memref<8x4xf32, #tpu.memory_space<vmem>>) attributes {dimension_semantics = [#tpu.dimension_semantics<parallel>], iteration_bounds = array<i64: 1>, scalar_prefetch = 0 : i64, scratch_operands = 0 : i64, tpu.core_type = #tpu.core_type<tc>, window_params = [{transform_indices = @transform_0, window_bounds = array<i64: 8, 32>}, {pipeline_mode = #tpu.pipeline_mode<synchronous>, transform_indices = @transform_1, window_bounds = array<i64: 32, 24>}, {pipeline_mode = #tpu.pipeline_mode<synchronous>, transform_indices = @transform_2, window_bounds = array<i64: 1, 24>}, {pipeline_mode = #tpu.pipeline_mode<synchronous>, transform_indices = @transform_3, window_bounds = array<i64: 24, 12>}, {pipeline_mode = #tpu.pipeline_mode<synchronous>, transform_indices = @transform_4, window_bounds = array<i64: 1, 12>}, {pipeline_mode = #tpu.pipeline_mode<synchronous>, transform_indices = @transform_5, window_bounds = array<i64: 12, 4>}, {pipeline_mode = #tpu.pipeline_mode<synchronous>, transform_indices = @transform_6, window_bounds = array<i64: 1, 4>}, {transform_indices = @transform_7, window_bounds = array<i64: 8, 4>}]} {
    %c0 = arith.constant 0 : index
    %c0_0 = arith.constant 0 : index
    %0 = vector.load %arg1[%c0, %c0_0] : memref<8x32xf32, #tpu.memory_space<vmem>>, vector<8x32xf32>
    %c0_1 = arith.constant 0 : index
    %c0_2 = arith.constant 0 : index
    %1 = vector.load %arg2[%c0_1, %c0_2] : memref<32x24xf32, #tpu.memory_space<vmem>>, vector<32x24xf32>
    %cst = arith.constant dense<0.000000e+00> : vector<8x24xf32>
    %2 = tpu.matmul %0, %1, %cst {dimension_numbers = #tpu.dot_dimension_numbers<[1], [0], [0], [1], [0, 0, 1, 1], [], []>} : vector<8x32xf32>, vector<32x24xf32>, vector<8x24xf32> -> vector<8x24xf32>
    %c0_3 = arith.constant 0 : index
    %c0_4 = arith.constant 0 : index
    %3 = vector.load %arg3[%c0_3, %c0_4] : memref<1x24xf32, #tpu.memory_space<vmem>>, vector<1x24xf32>
    %4 = vector.broadcast %3 : vector<1x24xf32> to vector<8x24xf32>
    %5 = arith.addf %2, %4 : vector<8x24xf32>
    %cst_5 = arith.constant 0.000000e+00 : f32
    %6 = vector.broadcast %cst_5 : f32 to vector<8x24xf32>
    %7 = arith.cmpf oge, %5, %6 : vector<8x24xf32>
    %cst_6 = arith.constant 0.00999999977 : f32
    %8 = vector.broadcast %cst_6 : f32 to vector<8x24xf32>
    %9 = arith.mulf %8, %5 : vector<8x24xf32>
    %10 = arith.select %7, %5, %9 : vector<8x24xi1>, vector<8x24xf32>
    %c0_7 = arith.constant 0 : index
    %c0_8 = arith.constant 0 : index
    %11 = vector.load %arg4[%c0_7, %c0_8] : memref<24x12xf32, #tpu.memory_space<vmem>>, vector<24x12xf32>
    %cst_9 = arith.constant dense<0.000000e+00> : vector<8x12xf32>
    %12 = tpu.matmul %10, %11, %cst_9 {dimension_numbers = #tpu.dot_dimension_numbers<[1], [0], [0], [1], [0, 0, 1, 1], [], []>} : vector<8x24xf32>, vector<24x12xf32>, vector<8x12xf32> -> vector<8x12xf32>
    %c0_10 = arith.constant 0 : index
    %c0_11 = arith.constant 0 : index
    %13 = vector.load %arg5[%c0_10, %c0_11] : memref<1x12xf32, #tpu.memory_space<vmem>>, vector<1x12xf32>
    %14 = vector.broadcast %13 : vector<1x12xf32> to vector<8x12xf32>
    %15 = arith.addf %12, %14 : vector<8x12xf32>
    %cst_12 = arith.constant 0.000000e+00 : f32
    %16 = vector.broadcast %cst_12 : f32 to vector<8x12xf32>
    %17 = arith.cmpf oge, %15, %16 : vector<8x12xf32>
    %cst_13 = arith.constant 0.00999999977 : f32
    %18 = vector.broadcast %cst_13 : f32 to vector<8x12xf32>
    %19 = arith.mulf %18, %15 : vector<8x12xf32>
    %20 = arith.select %17, %15, %19 : vector<8x12xi1>, vector<8x12xf32>
    %c0_14 = arith.constant 0 : index
    %c0_15 = arith.constant 0 : index
    %21 = vector.load %arg6[%c0_14, %c0_15] : memref<12x4xf32, #tpu.memory_space<vmem>>, vector<12x4xf32>
    %cst_16 = arith.constant dense<0.000000e+00> : vector<8x4xf32>
    %22 = tpu.matmul %20, %21, %cst_16 {dimension_numbers = #tpu.dot_dimension_numbers<[1], [0], [0], [1], [0, 0, 1, 1], [], []>} : vector<8x12xf32>, vector<12x4xf32>, vector<8x4xf32> -> vector<8x4xf32>
    %c0_17 = arith.constant 0 : index
    %c0_18 = arith.constant 0 : index
    %23 = vector.load %arg7[%c0_17, %c0_18] : memref<1x4xf32, #tpu.memory_space<vmem>>, vector<1x4xf32>
    %24 = vector.broadcast %23 : vector<1x4xf32> to vector<8x4xf32>
    %25 = arith.addf %22, %24 : vector<8x4xf32>
    %26 = arith.negf %25 : vector<8x4xf32>
    %27 = math.exp %26 : vector<8x4xf32>
    %cst_19 = arith.constant 1.000000e+00 : f32
    %28 = vector.broadcast %cst_19 : f32 to vector<8x4xf32>
    %29 = arith.addf %28, %27 : vector<8x4xf32>
    %30 = arith.divf %28, %29 : vector<8x4xf32>
    %c0_20 = arith.constant 0 : index
    %c0_21 = arith.constant 0 : index
    %31 = vector.load %arg8[%c0_20, %c0_21] : memref<8x4xf32, #tpu.memory_space<vmem>>, vector<8x4xf32>
    tpu.vector_store %arg8[%c0_20, %c0_21], %30 {strides = array<i32>} : memref<8x4xf32, #tpu.memory_space<vmem>>, vector<8x4xf32>,
    return
  }
  func.func @transform_0(%arg0: i32) -> (i32, i32) {
    %c0_i32 = arith.constant 0 : i32
    %c0_i32_0 = arith.constant 0 : i32
    return %arg0, %c0_i32 : i32, i32
  }
  func.func @transform_1(%arg0: i32) -> (i32, i32) {
    %c0_i32 = arith.constant 0 : i32
    %c0_i32_0 = arith.constant 0 : i32
    %c0_i32_1 = arith.constant 0 : i32
    return %c0_i32, %c0_i32_0 : i32, i32
  }
  func.func @transform_2(%arg0: i32) -> (i32, i32) {
    %c0_i32 = arith.constant 0 : i32
    %c0_i32_0 = arith.constant 0 : i32
    %c0_i32_1 = arith.constant 0 : i32
    return %c0_i32, %c0_i32_0 : i32, i32
  }
  func.func @transform_3(%arg0: i32) -> (i32, i32) {
    %c0_i32 = arith.constant 0 : i32
    %c0_i32_0 = arith.constant 0 : i32
    %c0_i32_1 = arith.constant 0 : i32
    return %c0_i32, %c0_i32_0 : i32, i32
  }
  func.func @transform_4(%arg0: i32) -> (i32, i32) {
    %c0_i32 = arith.constant 0 : i32
    %c0_i32_0 = arith.constant 0 : i32
    %c0_i32_1 = arith.constant 0 : i32
    return %c0_i32, %c0_i32_0 : i32, i32
  }
  func.func @transform_5(%arg0: i32) -> (i32, i32) {
    %c0_i32 = arith.constant 0 : i32
    %c0_i32_0 = arith.constant 0 : i32
    %c0_i32_1 = arith.constant 0 : i32
    return %c0_i32, %c0_i32_0 : i32, i32
  }
  func.func @transform_6(%arg0: i32) -> (i32, i32) {
    %c0_i32 = arith.constant 0 : i32
    %c0_i32_0 = arith.constant 0 : i32
    %c0_i32_1 = arith.constant 0 : i32
    return %c0_i32, %c0_i32_0 : i32, i32
  }
  func.func @transform_7(%arg0: i32) -> (i32, i32) {
    %c0_i32 = arith.constant 0 : i32
    %c0_i32_0 = arith.constant 0 : i32
    return %arg0, %c0_i32 : i32, i32
  }
}

</mosaic_0001>

<llo_original>
// kernel: neural_network_forward.1
$region0: #{neural_network_forward.1}
  #allocation0 [shape = 'u32[]', space=smem, size = 0x4, offset = 0x4, fixed_abs, tag = 'smem constant byte address 0x4 - core index']
  #allocation1 [shape = 'u32[144,128]{1,0:T(1,128)}', space=vmem, size = 0x12000, scoped, tag = 'internal scratch']
  %s0 = inlined_call_operand.vmem [shape: f32[8,32], index: 0, kind: input, shape index: {}]
  %s1 = inlined_call_operand.vmem [shape: f32[32,24], index: 1, kind: input, shape index: {}]
  %s2 = inlined_call_operand.vmem [shape: f32[1,24], index: 2, kind: input, shape index: {}]
  %s3 = inlined_call_operand.vmem [shape: f32[24,12], index: 3, kind: input, shape index: {}]
  %s4 = inlined_call_operand.vmem [shape: f32[1,12], index: 4, kind: input, shape index: {}]
  %s5 = inlined_call_operand.vmem [shape: f32[12,4], index: 5, kind: input, shape index: {}]
  %s6 = inlined_call_operand.vmem [shape: f32[1,4], index: 6, kind: input, shape index: {}]
  %s7 = inlined_call_operand.vmem [shape: f32[8,4], index: 7, kind: output, shape index: {}]
  %s8 = sld [smem:[#allocation0]]
  $region38: #{neural_network_forward.1} parent=0
    _
  %s10 = ssub.s32 1, %s8
  %s11 = scalar_select 0, %s10, %s8
  // Predicated region
  $region2: #{neural_network_forward.1} parent=0 // pred_check
    _
  $region3: #{neural_network_forward.1} parent=0 // pred_check_branch
    %13 = sbr.rel (0) target = $region5
  $region4: #{neural_network_forward.1} parent=0 // pred_region
    _
  $region5: #{neural_network_forward.1} parent=0 // pred_fallthru
    _
  // Predicated region
  $region6: #{neural_network_forward.1} parent=0 // pred_check
    _
  $region7: #{neural_network_forward.1} parent=0 // pred_check_branch
    %15 = sbr.rel (0) target = $region9
  $region8: #{neural_network_forward.1} parent=0 // pred_region
    _
  $region9: #{neural_network_forward.1} parent=0 // pred_fallthru
    _
  // Predicated region
  $region10: #{neural_network_forward.1} parent=0 // pred_check
    _
  $region11: #{neural_network_forward.1} parent=0 // pred_check_branch
    %17 = sbr.rel (0) target = $region13
  $region12: #{neural_network_forward.1} parent=0 // pred_region
    _
  $region13: #{neural_network_forward.1} parent=0 // pred_fallthru
    _
  // Predicated region
  $region14: #{neural_network_forward.1} parent=0 // pred_check
    _
  $region15: #{neural_network_forward.1} parent=0 // pred_check_branch
    %19 = sbr.rel (0) target = $region17
  $region16: #{neural_network_forward.1} parent=0 // pred_region
    _
  $region17: #{neural_network_forward.1} parent=0 // pred_fallthru
    _
  // Predicated region
  $region18: #{neural_network_forward.1} parent=0 // pred_check
    _
  $region19: #{neural_network_forward.1} parent=0 // pred_check_branch
    %21 = sbr.rel (0) target = $region21
  $region20: #{neural_network_forward.1} parent=0 // pred_region
    _
  $region21: #{neural_network_forward.1} parent=0 // pred_fallthru
    _
  // Predicated region
  $region22: #{neural_network_forward.1} parent=0 // pred_check
    _
  $region23: #{neural_network_forward.1} parent=0 // pred_check_branch
    %23 = sbr.rel (0) target = $region25
  $region24: #{neural_network_forward.1} parent=0 // pred_region
    _
  $region25: #{neural_network_forward.1} parent=0 // pred_fallthru
    _
  // Predicated region
  $region26: #{neural_network_forward.1} parent=0 // pred_check
    _
  $region27: #{neural_network_forward.1} parent=0 // pred_check_branch
    %25 = sbr.rel (0) target = $region29
  $region28: #{neural_network_forward.1} parent=0 // pred_region
    _
  $region29: #{neural_network_forward.1} parent=0 // pred_fallthru
    _
  %v26 = vld [vmem:[%s0] sm:$0xff]
  %v27 = vld [vmem:[%s1] sm:$0xff]
  %v28 = vld [vmem:[%s1 + $0x8] sm:$0xff]
  %v29 = vld [vmem:[%s1 + $0x10] sm:$0xff]
  %v30 = vld [vmem:[%s1 + $0x18] sm:$0xff]
  %v31 = vld [vmem:[%s2] sm:$0x1]
  %v33 = vlaneseq
  %v34 = vshrl.u32 %v33, 7
  %v35 = vsub.s32 0, %v34
  %v36 = vrot.slane %v31, %v35
  %vm38 = vcmask 261120
  %v40 = vsel %vm38, %v26, 0
  %42 = vmatprep.subr.mxu0 0.0
  %43 = vmatpush1.msra.mxu0 0.0
  %44 = vmatprep.subr.mxu0 0.0
  %45 = vmatpush1.msra.mxu0 0.0
  %46 = vmatprep.subr.mxu0 0.0
  %47 = vmatpush1.msra.mxu0 0.0
  %48 = vmatprep.subr.mxu0 0.0
  %49 = vmatpush1.msra.mxu0 0.0
  %50 = vmatprep.subr.mxu0 0.0
  %51 = vmatpush1.msra.mxu0 0.0
  %52 = vmatprep.subr.mxu0 0.0
  %53 = vmatpush1.msra.mxu0 0.0
  %54 = vmatprep.subr.mxu0 0.0
  %55 = vmatpush1.msra.mxu0 0.0
  %56 = vmatprep.subr.mxu0 0.0
  %57 = vmatpush1.msra.mxu0 0.0
  %58 = vmatprep.subr.mxu0 0.0
  %59 = vmatpush1.msra.mxu0 0.0
  %60 = vmatprep.subr.mxu0 0.0
  %61 = vmatpush1.msra.mxu0 0.0
  %62 = vmatprep.subr.mxu0 0.0
  %63 = vmatpush1.msra.mxu0 0.0
  %64 = vmatprep.subr.mxu0 0.0
  %65 = vmatpush1.msra.mxu0 0.0
  %66 = vmatprep.subr.mxu0 0.0
  %67 = vmatpush1.msra.mxu0 %v30
  %68 = vmatprep.subr.mxu0 0.0
  %69 = vmatpush1.msra.mxu0 %v29
  %70 = vmatprep.subr.mxu0 0.0
  %71 = vmatpush1.msra.mxu0 %v28
  %72 = vmatprep.subr.mxu0 0.0
  %73 = vmatpush1.msra.mxu0 %v27
  %74 = vmatprep.subr.mxu0 0.0
  %75 = vmatpush2.msra.mxu0 0.0
  %76 = vmatprep.subr.mxu0 0.0
  %77 = vmatpush2.msra.mxu0 0.0
  %78 = vmatprep.subr.mxu0 0.0
  %79 = vmatpush2.msra.mxu0 0.0
  %80 = vmatprep.subr.mxu0 0.0
  %81 = vmatpush2.msra.mxu0 0.0
  %82 = vmatprep.subr.mxu0 0.0
  %83 = vmatpush2.msra.mxu0 0.0
  %84 = vmatprep.subr.mxu0 0.0
  %85 = vmatpush2.msra.mxu0 0.0
  %86 = vmatprep.subr.mxu0 0.0
  %87 = vmatpush2.msra.mxu0 0.0
  %88 = vmatprep.subr.mxu0 0.0
  %89 = vmatpush2.msra.mxu0 0.0
  %90 = vmatprep.subr.mxu0 0.0
  %91 = vmatpush2.msra.mxu0 0.0
  %92 = vmatprep.subr.mxu0 0.0
  %93 = vmatpush2.msra.mxu0 0.0
  %94 = vmatprep.subr.mxu0 0.0
  %95 = vmatpush2.msra.mxu0 0.0
  %96 = vmatprep.subr.mxu0 0.0
  %97 = vmatpush2.msra.mxu0 0.0
  %98 = vmatprep.subr.mxu0 0.0
  %99 = vmatpush2.msra.mxu0 0.0
  %100 = vmatprep.subr.mxu0 0.0
  %101 = vmatpush2.msra.mxu0 0.0
  %102 = vmatprep.subr.mxu0 0.0
  %103 = vmatpush2.msra.mxu0 0.0
  %104 = vmatprep.subr.mxu0 0.0
  %105 = vmatpush2.msra.mxu0 0.0
  %106 = vmatprep.mubr.f32.mxu0 0.0
  %107 = vmatmul.mubr.f32.gmra.mxu0 %v40
  %v108 = vpop.f32.mrf.mxu0
  %v109 = vadd.f32 %v36, %v108
  %v110 = vpop.f32.mrf.mxu0
  %111 = vdwg.mxu0
  %vm112 = vcmp.ge.f32.partialorder %v109, 0.0
  %v113 = vmul.f32 %v109, 0.01
  %v114 = vsel %vm112, %v109, %v113
  %v115 = vld [vmem:[%s3] sm:$0xff]
  %v116 = vld [vmem:[%s3 + $0x8] sm:$0xff]
  %v117 = vld [vmem:[%s3 + $0x10] sm:$0xff]
  %v118 = vld [vmem:[%s4] sm:$0x1]
  %v120 = vlaneseq
  %v121 = vshrl.u32 %v120, 7
  %v122 = vsub.s32 0, %v121
  %v123 = vrot.slane %v118, %v122
  %vm125 = vcmask 195584
  %v127 = vsel %vm125, %v114, 0
  %129 = vmatprep.subr.mxu0 0.0
  %130 = vmatpush1.msra.mxu0 0.0
  %131 = vmatprep.subr.mxu0 0.0
  %132 = vmatpush1.msra.mxu0 0.0
  %133 = vmatprep.subr.mxu0 0.0
  %134 = vmatpush1.msra.mxu0 0.0
  %135 = vmatprep.subr.mxu0 0.0
  %136 = vmatpush1.msra.mxu0 0.0
  %137 = vmatprep.subr.mxu0 0.0
  %138 = vmatpush1.msra.mxu0 0.0
  %139 = vmatprep.subr.mxu0 0.0
  %140 = vmatpush1.msra.mxu0 0.0
  %141 = vmatprep.subr.mxu0 0.0
  %142 = vmatpush1.msra.mxu0 0.0
  %143 = vmatprep.subr.mxu0 0.0
  %144 = vmatpush1.msra.mxu0 0.0
  %145 = vmatprep.subr.mxu0 0.0
  %146 = vmatpush1.msra.mxu0 0.0
  %147 = vmatprep.subr.mxu0 0.0
  %148 = vmatpush1.msra.mxu0 0.0
  %149 = vmatprep.subr.mxu0 0.0
  %150 = vmatpush1.msra.mxu0 0.0
  %151 = vmatprep.subr.mxu0 0.0
  %152 = vmatpush1.msra.mxu0 0.0
  %153 = vmatprep.subr.mxu0 0.0
  %154 = vmatpush1.msra.mxu0 0.0
  %155 = vmatprep.subr.mxu0 0.0
  %156 = vmatpush1.msra.mxu0 %v117
  %157 = vmatprep.subr.mxu0 0.0
  %158 = vmatpush1.msra.mxu0 %v116
  %159 = vmatprep.subr.mxu0 0.0
  %160 = vmatpush1.msra.mxu0 %v115
  %161 = vmatprep.subr.mxu0 0.0
  %162 = vmatpush2.msra.mxu0 0.0
  %163 = vmatprep.subr.mxu0 0.0
  %164 = vmatpush2.msra.mxu0 0.0
  %165 = vmatprep.subr.mxu0 0.0
  %166 = vmatpush2.msra.mxu0 0.0
  %167 = vmatprep.subr.mxu0 0.0
  %168 = vmatpush2.msra.mxu0 0.0
  %169 = vmatprep.subr.mxu0 0.0
  %170 = vmatpush2.msra.mxu0 0.0
  %171 = vmatprep.subr.mxu0 0.0
  %172 = vmatpush2.msra.mxu0 0.0
  %173 = vmatprep.subr.mxu0 0.0
  %174 = vmatpush2.msra.mxu0 0.0
  %175 = vmatprep.subr.mxu0 0.0
  %176 = vmatpush2.msra.mxu0 0.0
  %177 = vmatprep.subr.mxu0 0.0
  %178 = vmatpush2.msra.mxu0 0.0
  %179 = vmatprep.subr.mxu0 0.0
  %180 = vmatpush2.msra.mxu0 0.0
  %181 = vmatprep.subr.mxu0 0.0
  %182 = vmatpush2.msra.mxu0 0.0
  %183 = vmatprep.subr.mxu0 0.0
  %184 = vmatpush2.msra.mxu0 0.0
  %185 = vmatprep.subr.mxu0 0.0
  %186 = vmatpush2.msra.mxu0 0.0
  %187 = vmatprep.subr.mxu0 0.0
  %188 = vmatpush2.msra.mxu0 0.0
  %189 = vmatprep.subr.mxu0 0.0
  %190 = vmatpush2.msra.mxu0 0.0
  %191 = vmatprep.subr.mxu0 0.0
  %192 = vmatpush2.msra.mxu0 0.0
  %193 = vmatprep.mubr.f32.mxu0 0.0
  %194 = vmatmul.mubr.f32.gmra.mxu0 %v127
  %v195 = vpop.f32.mrf.mxu0
  %v196 = vadd.f32 %v123, %v195
  %v197 = vpop.f32.mrf.mxu0
  %198 = vdwg.mxu0
  %vm199 = vcmp.ge.f32.partialorder %v196, 0.0
  %v200 = vmul.f32 %v196, 0.01
  %v201 = vsel %vm199, %v196, %v200
  %v202 = vld [vmem:[%s5] sm:$0xff]
  %v203 = vld [vmem:[%s5 + $0x8] sm:$0xf]
  %v204 = vld [vmem:[%s6] sm:$0x1]
  %v206 = vlaneseq
  %v207 = vshrl.u32 %v206, 7
  %v208 = vsub.s32 0, %v207
  %v209 = vrot.slane %v204, %v208
  %vm211 = vcmask 97280
  %v213 = vsel %vm211, %v201, 0
  %vm215 = vcmask 1043456
  %v217 = vsel %vm215, %v203, 0
  %219 = vmatprep.subr.mxu0 0.0
  %220 = vmatpush1.msra.mxu0 0.0
  %221 = vmatprep.subr.mxu0 0.0
  %222 = vmatpush1.msra.mxu0 0.0
  %223 = vmatprep.subr.mxu0 0.0
  %224 = vmatpush1.msra.mxu0 0.0
  %225 = vmatprep.subr.mxu0 0.0
  %226 = vmatpush1.msra.mxu0 0.0
  %227 = vmatprep.subr.mxu0 0.0
  %228 = vmatpush1.msra.mxu0 0.0
  %229 = vmatprep.subr.mxu0 0.0
  %230 = vmatpush1.msra.mxu0 0.0
  %231 = vmatprep.subr.mxu0 0.0
  %232 = vmatpush1.msra.mxu0 0.0
  %233 = vmatprep.subr.mxu0 0.0
  %234 = vmatpush1.msra.mxu0 0.0
  %235 = vmatprep.subr.mxu0 0.0
  %236 = vmatpush1.msra.mxu0 0.0
  %237 = vmatprep.subr.mxu0 0.0
  %238 = vmatpush1.msra.mxu0 0.0
  %239 = vmatprep.subr.mxu0 0.0
  %240 = vmatpush1.msra.mxu0 0.0
  %241 = vmatprep.subr.mxu0 0.0
  %242 = vmatpush1.msra.mxu0 0.0
  %243 = vmatprep.subr.mxu0 0.0
  %244 = vmatpush1.msra.mxu0 0.0
  %245 = vmatprep.subr.mxu0 0.0
  %246 = vmatpush1.msra.mxu0 0.0
  %247 = vmatprep.subr.mxu0 0.0
  %248 = vmatpush1.msra.mxu0 %v217
  %249 = vmatprep.subr.mxu0 0.0
  %250 = vmatpush1.msra.mxu0 %v202
  %251 = vmatprep.subr.mxu0 0.0
  %252 = vmatpush2.msra.mxu0 0.0
  %253 = vmatprep.subr.mxu0 0.0
  %254 = vmatpush2.msra.mxu0 0.0
  %255 = vmatprep.subr.mxu0 0.0
  %256 = vmatpush2.msra.mxu0 0.0
  %257 = vmatprep.subr.mxu0 0.0
  %258 = vmatpush2.msra.mxu0 0.0
  %259 = vmatprep.subr.mxu0 0.0
  %260 = vmatpush2.msra.mxu0 0.0
  %261 = vmatprep.subr.mxu0 0.0
  %262 = vmatpush2.msra.mxu0 0.0
  %263 = vmatprep.subr.mxu0 0.0
  %264 = vmatpush2.msra.mxu0 0.0
  %265 = vmatprep.subr.mxu0 0.0
  %266 = vmatpush2.msra.mxu0 0.0
  %267 = vmatprep.subr.mxu0 0.0
  %268 = vmatpush2.msra.mxu0 0.0
  %269 = vmatprep.subr.mxu0 0.0
  %270 = vmatpush2.msra.mxu0 0.0
  %271 = vmatprep.subr.mxu0 0.0
  %272 = vmatpush2.msra.mxu0 0.0
  %273 = vmatprep.subr.mxu0 0.0
  %274 = vmatpush2.msra.mxu0 0.0
  %275 = vmatprep.subr.mxu0 0.0
  %276 = vmatpush2.msra.mxu0 0.0
  %277 = vmatprep.subr.mxu0 0.0
  %278 = vmatpush2.msra.mxu0 0.0
  %279 = vmatprep.subr.mxu0 0.0
  %280 = vmatpush2.msra.mxu0 0.0
  %281 = vmatprep.subr.mxu0 0.0
  %282 = vmatpush2.msra.mxu0 0.0
  %283 = vmatprep.mubr.f32.mxu0 0.0
  %284 = vmatmul.mubr.f32.gmra.mxu0 %v213
  %v285 = vpop.f32.mrf.mxu0
  %v286 = vadd.f32 %v209, %v285
  %v287 = vpop.f32.mrf.mxu0
  %288 = vdwg.mxu0
  %v289 = vxor.u32 %v286, 2147483648
  %v290 = vmul.f32 %v289, 1.442695
  %v291 = vpow.pop %v290
  %v292 = vadd.f32 %v291, 1.0
  %v293 = vrcp.pop %v292
  %v294 = vmul.f32 1.0, %v293
  %vm295 = vcmask 31744
  %296 = vst.msk [vmem:[%s7] sm:$0xff] %vm295, %v294
  // Predicated region
  $region30: #{neural_network_forward.1} parent=0 // pred_check
    _
  $region31: #{neural_network_forward.1} parent=0 // pred_check_branch
    %298 = sbr.rel (0) target = $region33
  $region32: #{neural_network_forward.1} parent=0 // pred_region
    _
  $region33: #{neural_network_forward.1} parent=0 // pred_fallthru
    _
  // Predicated region
  $region34: #{neural_network_forward.1} parent=0 // pred_check
    _
  $region35: #{neural_network_forward.1} parent=0 // pred_check_branch
    %300 = sbr.rel (0) target = $region37
  $region36: #{neural_network_forward.1} parent=0 // pred_region
    _
  $region37: #{neural_network_forward.1} parent=0 // pred_fallthru
    _

</llo_original>
